<compile_context>
chip_gen: v5e
topology: v5e:2x2
jax: 0.10.0
libtpu: 0.0.40
codegen_flags: <defaults>
</compile_context>

<pallas_src>
import jax
import jax.numpy as jnp
from jax.experimental import pallas as pl
from jax.experimental.pallas import tpu as pltpu


def _softargmax_kernel(x_ref, w_ref, o_ref):
    # x_ref: (TILE_M, K_eff)  w_ref: (K_eff, OUT_COLS)  o_ref: (TILE_M, OUT_COLS)
    # Weighted spatial sum == MXU matmul; accumulate in f32.
    o_ref[...] = jnp.dot(
        x_ref[...], w_ref[...], preferred_element_type=jnp.float32
    ).astype(o_ref.dtype)


def make_interp_weights(kernel_size, dtype=jnp.float32):
    """Replicates the linspace_2d-based depthwise weights of the module.

    kernel_size = (ks0, ks1); the depthwise kernel spatial dims are
    (H, W) = (ks1, ks0), exactly as the PyTorch module assigns w1.
    Returns a (H*W, 2) matrix whose columns are the dim=0 (x) and dim=1 (y)
    linear-interpolation maps, flattened row-major.
    """
    ks0, ks1 = kernel_size
    H, W = ks1, ks0
    lin_w = jnp.linspace(0.0, 1.0, W, dtype=jnp.float32)   # varies along width  (dim=0)
    lin_h = jnp.linspace(0.0, 1.0, H, dtype=jnp.float32)   # varies along height (dim=1)
    wx = jnp.broadcast_to(lin_w[None, :], (H, W))           # each row = linspace over W
    wy = jnp.broadcast_to(lin_h[:, None], (H, W))           # each col = linspace over H
    return jnp.stack([wx.reshape(-1), wy.reshape(-1)], axis=-1).astype(dtype)


def _block_diag_weights(w_mat, g):
    """(K, 2) -> block-diagonal (g*K, 2*g); fold block j feeds columns 2j, 2j+1."""
    K = w_mat.shape[0]
    eye = jnp.eye(g, dtype=w_mat.dtype)
    wbd = jnp.einsum("ij,kd->ikjd", eye, w_mat)              # (g, K, g, 2)
    return wbd.reshape(g * K, 2 * g)


def _round_up(x, m):
    return ((x + m - 1) // m) * m


def _fold_factor(M, K, max_search=512):
    """Smallest g with g*K >= 128 lanes and M % g == 0 (1 if K already >= 128)."""
    if K >= 128:
        return 1
    g0 = -(-128 // K)                                        # ceil(128 / K)
    upper = min(M, 4 * g0, max_search)
    for g in range(g0, upper + 1):
        if M % g == 0:
            return g
    return 1   # no usable fold; lane-sparse K is still correct, just slower


def _vmem_limit_bytes():
    """Generation-aware scoped-VMEM limit (~75% of per-core capacity)."""
    try:
        cap = int(pltpu.get_tpu_info().vmem_capacity_bytes)
    except Exception:
        cap = 64 * 1024 * 1024   # conservative default (v7x per-TensorCore)
    return max(32 * 1024 * 1024, min(int(cap * 3 // 4), 112 * 1024 * 1024))


def _pick_tile_m(M, K_eff, out_cols, in_itemsize, vmem_budget,
                 target_tile_bytes=8 * 1024 * 1024):
    """Rows per tile: ~8 MiB of streamed input, bounded so 2x input buffers +
    2x lane-padded (out_cols -> 128) f32 output buffers + weights fit VMEM."""
    out_row_bytes = _round_up(out_cols, 128) * 4             # padded output row, f32
    per_row = 2 * K_eff * in_itemsize + 2 * out_row_bytes    # double-buffered
    w_bytes = 2 * K_eff * _round_up(out_cols, 128) * 4       # resident weight buffers
    cap_rows = max(8, (vmem_budget - w_bytes) // per_row)
    tgt_rows = max(8, target_tile_bytes // max(1, K_eff * in_itemsize))
    tile_m = min(tgt_rows, cap_rows)
    # 128 covers every dtype's sublane multiple; fall back to 8 only if VMEM
    # is extremely tight (huge K_eff).
    mult = 128 if tile_m >= 128 else 8
    tile_m = max(mult, (tile_m // mult) * mult)
    if tile_m >= M:
        return M                       # single full-extent tile (always legal)
    # Keep the row-tile count even so ("parallel",) keeps both v7x TCs busy.
    grid_m = pl.cdiv(M, tile_m)
    if grid_m > 1 and grid_m % 2 == 1:
        tile_m2 = max(mult, _round_up(pl.cdiv(M, grid_m + 1), mult))
        tile_m = M if tile_m2 >= M else tile_m2
    return tile_m


def softargmax(x, kernel_size, *, use_pallas=None, tile_m=None):
    """x: (N, C, H, W) with (H, W) == (kernel_size[1], kernel_size[0]).

    Returns (N, C, 2) f32 with (x_coord, y_coord) per channel, matching the
    PyTorch Softargmax.forward (depthwise interp conv + squeeze + reshape + cat).
    """
    N, C, H, W = x.shape
    assert (H, W) == (kernel_size[1], kernel_size[0]), \
        "Softargmax requires spatial dims to equal the depthwise kernel size"

    M, K = N * C, H * W
    in_bytes = M * K * x.dtype.itemsize

    # Below ~1 MiB the XLA-fused weighted sum wins (per-call overhead dominates).
    if use_pallas is None:
        use_pallas = in_bytes >= (1 << 20)

    # Stream the input in its native dtype; match the weight dtype for bf16 so
    # the MXU feed stays single-pass (accumulation is f32 either way).
    w_dtype = jnp.bfloat16 if x.dtype == jnp.bfloat16 else jnp.float32
    w_mat = make_interp_weights(kernel_size, dtype=w_dtype)   # (K, 2)

    if not use_pallas:
        out = jnp.dot(x.reshape(M, K), w_mat, preferred_element_type=jnp.float32)
        return out.reshape(N, C, 2)

    # Small heatmaps: fold g channels per row so the streamed last dim (and the
    # matmul contraction) stays >= 128 lanes wide.
    g = _fold_factor(M, K)
    M_eff, K_eff, out_cols = M // g, g * K, 2 * g
    w_eff = w_mat if g == 1 else _block_diag_weights(w_mat, g)
    x_flat = x.reshape(M_eff, K_eff)                          # contiguous reshape, no upcast

    vmem_limit = _vmem_limit_bytes()
    if tile_m is None:
        tile_m = _pick_tile_m(M_eff, K_eff, out_cols, x.dtype.itemsize, vmem_limit)
    else:
        tile_m = min(tile_m, M_eff)
    grid_m = pl.cdiv(M_eff, tile_m)

    cost = pl.CostEstimate(
        flops=2 * M * K * 2,                                  # (M,K)x(K,2) matmul
        transcendentals=0,
        bytes_accessed=in_bytes + K_eff * out_cols * w_mat.dtype.itemsize + M * 2 * 4,
    )

    out_flat = pl.pallas_call(
        _softargmax_kernel,
        out_shape=jax.ShapeDtypeStruct((M_eff, out_cols), jnp.float32),
        grid=(grid_m,),
        in_specs=[
            # Streamed row tiles of the input; last dim is the full K_eff extent.
            pl.BlockSpec((tile_m, K_eff), lambda i: (i, 0)),
            # Small weight matrix, resident across the whole grid.
            pl.BlockSpec((K_eff, out_cols), lambda i: (0, 0)),
        ],
        out_specs=pl.BlockSpec((tile_m, out_cols), lambda i: (i, 0)),
        compiler_params=pltpu.CompilerParams(
            dimension_semantics=("parallel",),   # shard row tiles across TCs (v7x)
            vmem_limit_bytes=vmem_limit,         # generation-aware scoped VMEM
        ),
        cost_estimate=cost,
    )(x_flat, w_eff)

    return out_flat.reshape(M, 2).reshape(N, C, 2)


def softargmax_ref(x, kernel_size):
    """Pure-JAX reference (mirrors the PyTorch separable-conv formulation)."""
    N, C, H, W = x.shape
    w_mat = make_interp_weights(kernel_size)                  # (H*W, 2) f32
    wx = w_mat[:, 0].reshape(H, W)
    wy = w_mat[:, 1].reshape(H, W)
    xf = x.astype(jnp.float32)
    x_x = jnp.sum(xf * wx[None, None], axis=(-2, -1))         # depthwise conv -> (N, C)
    x_y = jnp.sum(xf * wy[None, None], axis=(-2, -1))
    return jnp.concatenate(
        [x_x.reshape(-1, C, 1), x_y.reshape(-1, C, 1)], axis=2
    )


if __name__ == "__main__":
    key = jax.random.PRNGKey(0)
    k1, k2, k3 = jax.random.split(key, 3)

    # Case 1: canonical small shape; force the Pallas path so the kernel runs.
    N, C = 2, 4
    kernel_size = (16, 16)                          # (ks0, ks1) -> (H, W) = (16, 16)
    H, W = kernel_size[1], kernel_size[0]
    x = jax.random.uniform(k1, (N, C, H, W), dtype=jnp.float32)
    out = jax.block_until_ready(softargmax(x, kernel_size, use_pallas=True))
    ref = softargmax_ref(x, kernel_size)
    assert out.shape == (N, C, 2), out.shape
    assert jnp.allclose(out, ref, atol=1e-5, rtol=1e-5), ("mismatch", out, ref)

    # Case 2: row count NOT divisible by the tile -> exercises the ragged,
    # masked last row tile (grid_m = 2 with tile_m = 128, M = 150).
    N2, C2 = 3, 50
    x2 = jax.random.uniform(k2, (N2, C2, H, W), dtype=jnp.float32)
    out2 = jax.block_until_ready(
        softargmax(x2, kernel_size, use_pallas=True, tile_m=128)
    )
    ref2 = softargmax_ref(x2, kernel_size)
    assert out2.shape == (N2, C2, 2), out2.shape
    assert jnp.allclose(out2, ref2, atol=1e-5, rtol=1e-5), ("mismatch", out2, ref2)

    # Case 3: small heatmap (K = 8*8 = 64 < 128) -> channel folding (g=2) keeps
    # the streamed last dim lane-dense (g*K = 128).
    N3, C3 = 2, 8
    ks3 = (8, 8)
    x3 = jax.random.uniform(k3, (N3, C3, ks3[1], ks3[0]), dtype=jnp.float32)
    out3 = jax.block_until_ready(softargmax(x3, ks3, use_pallas=True))
    ref3 = softargmax_ref(x3, ks3)
    assert out3.shape == (N3, C3, 2), out3.shape
    assert jnp.allclose(out3, ref3, atol=1e-5, rtol=1e-5), ("mismatch", out3, ref3)

    print("KERNEL_OK")
</pallas_src>

<mosaic_0001>
module attributes {stable_mosaic.version = 11 : i64} {
  func.func @_softargmax_kernel(%arg0: i32, %arg1: memref<8x256xf32, #tpu.memory_space<vmem>>, %arg2: memref<256x2xf32, #tpu.memory_space<vmem>>, %arg3: memref<8x2xf32, #tpu.memory_space<vmem>>) attributes {dimension_semantics = [#tpu.dimension_semantics<parallel>], iteration_bounds = array<i64: 1>, scalar_prefetch = 0 : i64, scratch_operands = 0 : i64, tpu.core_type = #tpu.core_type<tc>, window_params = [{transform_indices = @transform_0, window_bounds = array<i64: 8, 256>}, {pipeline_mode = #tpu.pipeline_mode<synchronous>, transform_indices = @transform_1, window_bounds = array<i64: 256, 2>}, {transform_indices = @transform_2, window_bounds = array<i64: 8, 2>}]} {
    %c0 = arith.constant 0 : index
    %c0_0 = arith.constant 0 : index
    %0 = vector.load %arg1[%c0, %c0_0] : memref<8x256xf32, #tpu.memory_space<vmem>>, vector<8x256xf32>
    %c0_1 = arith.constant 0 : index
    %c0_2 = arith.constant 0 : index
    %1 = vector.load %arg2[%c0_1, %c0_2] : memref<256x2xf32, #tpu.memory_space<vmem>>, vector<256x2xf32>
    %cst = arith.constant dense<0.000000e+00> : vector<8x2xf32>
    %2 = tpu.matmul %0, %1, %cst {dimension_numbers = #tpu.dot_dimension_numbers<[1], [0], [0], [1], [0, 0, 1, 1], [], []>} : vector<8x256xf32>, vector<256x2xf32>, vector<8x2xf32> -> vector<8x2xf32>
    %c0_3 = arith.constant 0 : index
    %c0_4 = arith.constant 0 : index
    %3 = vector.load %arg3[%c0_3, %c0_4] : memref<8x2xf32, #tpu.memory_space<vmem>>, vector<8x2xf32>
    tpu.vector_store %arg3[%c0_3, %c0_4], %2 {strides = array<i32>} : memref<8x2xf32, #tpu.memory_space<vmem>>, vector<8x2xf32>,
    return
  }
  func.func @transform_0(%arg0: i32) -> (i32, i32) {
    %c0_i32 = arith.constant 0 : i32
    %c0_i32_0 = arith.constant 0 : i32
    return %arg0, %c0_i32 : i32, i32
  }
  func.func @transform_1(%arg0: i32) -> (i32, i32) {
    %c0_i32 = arith.constant 0 : i32
    %c0_i32_0 = arith.constant 0 : i32
    %c0_i32_1 = arith.constant 0 : i32
    return %c0_i32, %c0_i32_0 : i32, i32
  }
  func.func @transform_2(%arg0: i32) -> (i32, i32) {
    %c0_i32 = arith.constant 0 : i32
    %c0_i32_0 = arith.constant 0 : i32
    return %arg0, %c0_i32 : i32, i32
  }
}

</mosaic_0001>

<llo_original>
// kernel: tpu_custom_call.1
$region0: #{tpu_custom_call.1}
  #allocation0 [shape = 'u32[]', space=smem, size = 0x4, offset = 0x4, fixed_abs, tag = 'smem constant byte address 0x4 - core index']
  #allocation1 [shape = 'u32[72,128]{1,0:T(1,128)}', space=vmem, size = 0x9000, scoped, tag = 'internal scratch']
  %s0 = inlined_call_operand.vmem [shape: f32[8,256], index: 0, kind: input, shape index: {}]
  %s1 = inlined_call_operand.vmem [shape: f32[256,2], index: 1, kind: input, shape index: {}]
  %s2 = inlined_call_operand.vmem [shape: f32[8,2], index: 2, kind: output, shape index: {}]
  %s3 = sld [smem:[#allocation0]]
  $region18: #{tpu_custom_call.1} parent=0
    _
  %s5 = ssub.s32 1, %s3
  %s6 = scalar_select 0, %s5, %s3
  // Predicated region
  $region2: #{tpu_custom_call.1} parent=0 // pred_check
    _
  $region3: #{tpu_custom_call.1} parent=0 // pred_check_branch
    %8 = sbr.rel (0) target = $region5
  $region4: #{tpu_custom_call.1} parent=0 // pred_region
    _
  $region5: #{tpu_custom_call.1} parent=0 // pred_fallthru
    _
  // Predicated region
  $region6: #{tpu_custom_call.1} parent=0 // pred_check
    _
  $region7: #{tpu_custom_call.1} parent=0 // pred_check_branch
    %10 = sbr.rel (0) target = $region9
  $region8: #{tpu_custom_call.1} parent=0 // pred_region
    _
  $region9: #{tpu_custom_call.1} parent=0 // pred_fallthru
    _
  %v11 = vld [vmem:[%s0] sm:$0xff]
  %v12 = vld [vmem:[%s0 + $0x8] sm:$0xff]
  %v13 = vld [vmem:[%s1] sm:$0xff]
  %v14 = vld [vmem:[%s1 + $0x8] sm:$0xff]
  %v15 = vld [vmem:[%s1 + $0x10] sm:$0xff]
  %v16 = vld [vmem:[%s1 + $0x18] sm:$0xff]
  %v17 = vld [vmem:[%s1 + $0x20] sm:$0xff]
  %v18 = vld [vmem:[%s1 + $0x28] sm:$0xff]
  %v19 = vld [vmem:[%s1 + $0x30] sm:$0xff]
  %v20 = vld [vmem:[%s1 + $0x38] sm:$0xff]
  %v21 = vld [vmem:[%s1 + $0x40] sm:$0xff]
  %v22 = vld [vmem:[%s1 + $0x48] sm:$0xff]
  %v23 = vld [vmem:[%s1 + $0x50] sm:$0xff]
  %v24 = vld [vmem:[%s1 + $0x58] sm:$0xff]
  %v25 = vld [vmem:[%s1 + $0x60] sm:$0xff]
  %v26 = vld [vmem:[%s1 + $0x68] sm:$0xff]
  %v27 = vld [vmem:[%s1 + $0x70] sm:$0xff]
  %v28 = vld [vmem:[%s1 + $0x78] sm:$0xff]
  %v29 = vld [vmem:[%s1 + $0x80] sm:$0xff]
  %v30 = vld [vmem:[%s1 + $0x88] sm:$0xff]
  %v31 = vld [vmem:[%s1 + $0x90] sm:$0xff]
  %v32 = vld [vmem:[%s1 + $0x98] sm:$0xff]
  %v33 = vld [vmem:[%s1 + $0xa0] sm:$0xff]
  %v34 = vld [vmem:[%s1 + $0xa8] sm:$0xff]
  %v35 = vld [vmem:[%s1 + $0xb0] sm:$0xff]
  %v36 = vld [vmem:[%s1 + $0xb8] sm:$0xff]
  %v37 = vld [vmem:[%s1 + $0xc0] sm:$0xff]
  %v38 = vld [vmem:[%s1 + $0xc8] sm:$0xff]
  %v39 = vld [vmem:[%s1 + $0xd0] sm:$0xff]
  %v40 = vld [vmem:[%s1 + $0xd8] sm:$0xff]
  %v41 = vld [vmem:[%s1 + $0xe0] sm:$0xff]
  %v42 = vld [vmem:[%s1 + $0xe8] sm:$0xff]
  %v43 = vld [vmem:[%s1 + $0xf0] sm:$0xff]
  %v44 = vld [vmem:[%s1 + $0xf8] sm:$0xff]
  %45 = vmatpush.msra.mxu0 %v28
  %46 = vmatpush.msra.mxu0 %v27
  %47 = vmatpush.msra.mxu0 %v26
  %48 = vmatpush.msra.mxu0 %v25
  %49 = vmatpush.msra.mxu0 %v24
  %50 = vmatpush.msra.mxu0 %v23
  %51 = vmatpush.msra.mxu0 %v22
  %52 = vmatpush.msra.mxu0 %v21
  %53 = vmatpush.msra.mxu0 %v20
  %54 = vmatpush.msra.mxu0 %v19
  %55 = vmatpush.msra.mxu0 %v18
  %56 = vmatpush.msra.mxu0 %v17
  %57 = vmatpush.msra.mxu0 %v16
  %58 = vmatpush.msra.mxu0 %v15
  %59 = vmatpush.msra.mxu0 %v14
  %60 = vmatpush.msra.mxu0 %v13
  %61 = vmatmul.f32.gmra.mxu0 %v11
  %v62 = vpop.f32.mrf.mxu0
  %v63 = vadd.f32 0.0, %v62
  %64 = vdwg.mxu0
  %65 = vmatpush.msra.mxu0 %v44
  %66 = vmatpush.msra.mxu0 %v43
  %67 = vmatpush.msra.mxu0 %v42
  %68 = vmatpush.msra.mxu0 %v41
  %69 = vmatpush.msra.mxu0 %v40
  %70 = vmatpush.msra.mxu0 %v39
  %71 = vmatpush.msra.mxu0 %v38
  %72 = vmatpush.msra.mxu0 %v37
  %73 = vmatpush.msra.mxu0 %v36
  %74 = vmatpush.msra.mxu0 %v35
  %75 = vmatpush.msra.mxu0 %v34
  %76 = vmatpush.msra.mxu0 %v33
  %77 = vmatpush.msra.mxu0 %v32
  %78 = vmatpush.msra.mxu0 %v31
  %79 = vmatpush.msra.mxu0 %v30
  %80 = vmatpush.msra.mxu0 %v29
  %81 = vmatmul.f32.gmra.mxu0 %v12
  %v82 = vpop.f32.mrf.mxu0
  %v83 = vadd.f32 %v63, %v82
  %84 = vdwg.mxu0
  %vm85 = vcmask 15360
  %86 = vst.msk [vmem:[%s2] sm:$0xff] %vm85, %v83
  // Predicated region
  $region10: #{tpu_custom_call.1} parent=0 // pred_check
    _
  $region11: #{tpu_custom_call.1} parent=0 // pred_check_branch
    %88 = sbr.rel (0) target = $region13
  $region12: #{tpu_custom_call.1} parent=0 // pred_region
    _
  $region13: #{tpu_custom_call.1} parent=0 // pred_fallthru
    _
  // Predicated region
  $region14: #{tpu_custom_call.1} parent=0 // pred_check
    _
  $region15: #{tpu_custom_call.1} parent=0 // pred_check_branch
    %90 = sbr.rel (0) target = $region17
  $region16: #{tpu_custom_call.1} parent=0 // pred_region
    _
  $region17: #{tpu_custom_call.1} parent=0 // pred_fallthru
    _

</llo_original>
